<compile_context>
chip_gen: v5e
topology: v5e:2x2
jax: 0.10.0
libtpu: 0.0.40
codegen_flags: <defaults>
</compile_context>

<pallas_src>
import functools

import jax
import jax.numpy as jnp
from jax.experimental import pallas as pl
from jax.experimental.pallas import tpu as pltpu


def _jarvis_lstm_kernel(x2d_ref, wih_ref, whh_ref, b_ref, wfc_ref, bfc_ref,
                        out_ref, hbuf_ref, *, T, B, H, G):
    # ---- 1) Packed input projection for ALL timesteps (bias folded in). ----
    # gx[:, 0:H]=i, [H:2H]=f, [2H:3H]=g, [3H:4H]=o  (torch gate order).
    gx = (jnp.dot(x2d_ref[...], wih_ref[...],
                  preferred_element_type=jnp.float32)
          + b_ref[...])                                           # (T*B, 4H)

    whh = whh_ref[...]                                            # (H, 4H)

    # ---- 2) Recurrence, fully unrolled (T is a tiny static int). -----------
    # ONE packed (B, H) @ (H, 4H) MXU matmul per step on the serial path.
    h = jnp.zeros((B, H), jnp.float32)
    c = jnp.zeros((B, H), jnp.float32)
    for t in range(T):
        gates = gx[t * B:(t + 1) * B, :] + jnp.dot(
            h, whh, preferred_element_type=jnp.float32)           # (B, 4H)
        i_t = jax.nn.sigmoid(gates[:, 0 * H:1 * H])
        f_t = jax.nn.sigmoid(gates[:, 1 * H:2 * H])
        g_t = jnp.tanh(gates[:, 2 * H:3 * H])
        o_t = jax.nn.sigmoid(gates[:, 3 * H:4 * H])
        c = f_t * c + i_t * g_t
        h = o_t * jnp.tanh(c)
        # Time-major (T, B, H) buffer, row = t*B + b — exactly the layout that
        # torch's .contiguous().view(batch, -1) reinterprets.
        hbuf_ref[t * B:(t + 1) * B, :] = h

    # ---- 3) Fused final Linear over the raw (T,B,H)->(B,T*H) view. ---------
    # flat[rb, m*H:(m+1)*H] == hbuf[rb*T + m, :], so
    #   out[rb] = sum_m hbuf[rb*T + m] @ wfc_g[m]
    # Rows {m, m+T, ..., m+(B-1)*T} are one sublane-strided load per m.
    acc = jnp.zeros((B, G), jnp.float32)
    for m in range(T):
        rows = hbuf_ref[pl.ds(m, B, stride=T), :]                 # (B, H)
        acc = acc + jnp.dot(rows, wfc_ref[m],
                            preferred_element_type=jnp.float32)   # (B, G)
    out_ref[...] = acc + bfc_ref[...]


def jarvis_lstm_forward(x, params):
    """x: (T, B, I) time-major, matching nn.LSTM(batch_first=False)."""
    T, B, I = x.shape
    w_ih, w_hh = params["w_ih"], params["w_hh"]     # (4H, I), (4H, H) torch layout
    b_ih, b_hh = params["b_ih"], params["b_hh"]     # (4H,), (4H,)
    w_fc, b_fc = params["w_fc"], params["b_fc"]     # (G, T*H), (G,)
    H = w_hh.shape[1]
    G = w_fc.shape[0]

    # Repack in the wrapper (outside the kernel):
    #   * packed gate weights: transpose of torch layout gives lane order
    #     [i | f | g | o] directly,
    #   * summed bias as a single (1, 4H) row,
    #   * FC weight pre-split per time-block: (T, H, G).
    wih_p = w_ih.T                                                # (I, 4H)
    whh_p = w_hh.T                                                # (H, 4H)
    b_p = (b_ih + b_hh).reshape(1, 4 * H)                         # (1, 4H)
    wfc_g = w_fc.T.reshape(T, H, G)                               # (T, H, G)
    bfc = b_fc.reshape(1, G)                                      # (1, G)
    x2d = x.reshape(T * B, I)                                     # (T*B, I)

    kernel = functools.partial(_jarvis_lstm_kernel, T=T, B=B, H=H, G=G)

    return pl.pallas_call(
        kernel,
        out_shape=jax.ShapeDtypeStruct((B, G), jnp.float32),
        grid=(1,),
        in_specs=[
            pl.BlockSpec((T * B, I), lambda i: (0, 0)),
            pl.BlockSpec((I, 4 * H), lambda i: (0, 0)),
            pl.BlockSpec((H, 4 * H), lambda i: (0, 0)),
            pl.BlockSpec((1, 4 * H), lambda i: (0, 0)),
            pl.BlockSpec((T, H, G), lambda i: (0, 0, 0)),
            pl.BlockSpec((1, G), lambda i: (0, 0)),
        ],
        out_specs=pl.BlockSpec((B, G), lambda i: (0, 0)),
        scratch_shapes=[pltpu.VMEM((T * B, H), jnp.float32)],
        compiler_params=pltpu.CompilerParams(
            dimension_semantics=("arbitrary",)),
    )(x2d, wih_p, whh_p, b_p, wfc_g, bfc)


if __name__ == "__main__":
    hidden_dim, input_size, gesture_size, seq_len = 32, 4, 8, 8
    batch = 2

    key = jax.random.PRNGKey(0)
    ks = jax.random.split(key, 7)
    bound = 1.0 / (hidden_dim ** 0.5)     # PyTorch default uniform init bound
    u = lambda kk, shape: jax.random.uniform(kk, shape, jnp.float32,
                                             -bound, bound)
    params = {
        "w_ih": u(ks[0], (4 * hidden_dim, input_size)),
        "w_hh": u(ks[1], (4 * hidden_dim, hidden_dim)),
        "b_ih": u(ks[2], (4 * hidden_dim,)),
        "b_hh": u(ks[3], (4 * hidden_dim,)),
        "w_fc": u(ks[4], (gesture_size, hidden_dim * seq_len)),
        "b_fc": u(ks[5], (gesture_size,)),
    }
    x = jax.random.normal(ks[6], (seq_len, batch, input_size), jnp.float32)

    out = jax.jit(jarvis_lstm_forward)(x, params)
    out = jax.block_until_ready(out)

    # Pure-JAX reference (mirrors the PyTorch forward, incl. the raw .view).
    def ref_forward(x, p):
        T, B, _ = x.shape
        H = hidden_dim

        def step(carry, xt):
            h, c = carry
            gates = xt @ p["w_ih"].T + h @ p["w_hh"].T + p["b_ih"] + p["b_hh"]
            i, f, g, o = jnp.split(gates, 4, axis=-1)
            i, f, o = jax.nn.sigmoid(i), jax.nn.sigmoid(f), jax.nn.sigmoid(o)
            g = jnp.tanh(g)
            c = f * c + i * g
            h = o * jnp.tanh(c)
            return (h, c), h

        (_, _), hs = jax.lax.scan(
            step, (jnp.zeros((B, H), jnp.float32),
                   jnp.zeros((B, H), jnp.float32)), x)
        flat = hs.reshape(B, T * H)          # raw view of the (T,B,H) buffer
        return flat @ p["w_fc"].T + p["b_fc"]

    ref = ref_forward(x, params)
    assert out.shape == (batch, gesture_size)
    assert jnp.allclose(out, ref, atol=1e-4, rtol=1e-4), \
        f"max abs diff {jnp.max(jnp.abs(out - ref))}"
    print("KERNEL_OK")
</pallas_src>

<mosaic_0001>
module attributes {stable_mosaic.version = 11 : i64} {
  func.func @_jarvis_lstm_kernel(%arg0: i32, %arg1: memref<16x4xf32, #tpu.memory_space<vmem>>, %arg2: memref<4x128xf32, #tpu.memory_space<vmem>>, %arg3: memref<32x128xf32, #tpu.memory_space<vmem>>, %arg4: memref<1x128xf32, #tpu.memory_space<vmem>>, %arg5: memref<8x32x8xf32, #tpu.memory_space<vmem>>, %arg6: memref<1x8xf32, #tpu.memory_space<vmem>>, %arg7: memref<2x8xf32, #tpu.memory_space<vmem>>, %arg8: memref<16x32xf32, #tpu.memory_space<vmem>>) attributes {dimension_semantics = [#tpu.dimension_semantics<arbitrary>], iteration_bounds = array<i64: 1>, scalar_prefetch = 0 : i64, scratch_operands = 1 : i64, tpu.core_type = #tpu.core_type<tc>, window_params = [{pipeline_mode = #tpu.pipeline_mode<synchronous>, transform_indices = @transform_0, window_bounds = array<i64: 16, 4>}, {pipeline_mode = #tpu.pipeline_mode<synchronous>, transform_indices = @transform_1, window_bounds = array<i64: 4, 128>}, {pipeline_mode = #tpu.pipeline_mode<synchronous>, transform_indices = @transform_2, window_bounds = array<i64: 32, 128>}, {pipeline_mode = #tpu.pipeline_mode<synchronous>, transform_indices = @transform_3, window_bounds = array<i64: 1, 128>}, {pipeline_mode = #tpu.pipeline_mode<synchronous>, transform_indices = @transform_4, window_bounds = array<i64: 8, 32, 8>}, {pipeline_mode = #tpu.pipeline_mode<synchronous>, transform_indices = @transform_5, window_bounds = array<i64: 1, 8>}, {pipeline_mode = #tpu.pipeline_mode<synchronous>, transform_indices = @transform_6, window_bounds = array<i64: 2, 8>}]} {
    %c0 = arith.constant 0 : index
    %c0_0 = arith.constant 0 : index
    %0 = vector.load %arg1[%c0, %c0_0] : memref<16x4xf32, #tpu.memory_space<vmem>>, vector<16x4xf32>
    %c0_1 = arith.constant 0 : index
    %c0_2 = arith.constant 0 : index
    %1 = vector.load %arg2[%c0_1, %c0_2] : memref<4x128xf32, #tpu.memory_space<vmem>>, vector<4x128xf32>
    %cst = arith.constant dense<0.000000e+00> : vector<16x128xf32>
    %2 = tpu.matmul %0, %1, %cst {dimension_numbers = #tpu.dot_dimension_numbers<[1], [0], [0], [1], [0, 0, 1, 1], [], []>} : vector<16x4xf32>, vector<4x128xf32>, vector<16x128xf32> -> vector<16x128xf32>
    %c0_3 = arith.constant 0 : index
    %c0_4 = arith.constant 0 : index
    %3 = vector.load %arg4[%c0_3, %c0_4] : memref<1x128xf32, #tpu.memory_space<vmem>>, vector<1x128xf32>
    %4 = vector.broadcast %3 : vector<1x128xf32> to vector<16x128xf32>
    %5 = arith.addf %2, %4 : vector<16x128xf32>
    %c0_5 = arith.constant 0 : index
    %c0_6 = arith.constant 0 : index
    %6 = vector.load %arg3[%c0_5, %c0_6] : memref<32x128xf32, #tpu.memory_space<vmem>>, vector<32x128xf32>
    %cst_7 = arith.constant 0.000000e+00 : f32
    %7 = vector.broadcast %cst_7 : f32 to vector<2x32xf32>
    %cst_8 = arith.constant 0.000000e+00 : f32
    %8 = vector.broadcast %cst_8 : f32 to vector<2x32xf32>
    %9 = vector.extract_strided_slice %5 {offsets = [0, 0], sizes = [2, 128], strides = [1, 1]} : vector<16x128xf32> to vector<2x128xf32>
    %cst_9 = arith.constant dense<0.000000e+00> : vector<2x128xf32>
    %10 = tpu.matmul %7, %6, %cst_9 {dimension_numbers = #tpu.dot_dimension_numbers<[1], [0], [0], [1], [0, 0, 1, 1], [], []>} : vector<2x32xf32>, vector<32x128xf32>, vector<2x128xf32> -> vector<2x128xf32>
    %11 = arith.addf %9, %10 : vector<2x128xf32>
    %12 = vector.extract_strided_slice %11 {offsets = [0, 0], sizes = [2, 32], strides = [1, 1]} : vector<2x128xf32> to vector<2x32xf32>
    %13 = arith.negf %12 : vector<2x32xf32>
    %14 = math.exp %13 : vector<2x32xf32>
    %cst_10 = arith.constant 1.000000e+00 : f32
    %15 = vector.broadcast %cst_10 : f32 to vector<2x32xf32>
    %16 = arith.addf %15, %14 : vector<2x32xf32>
    %17 = arith.divf %15, %16 : vector<2x32xf32>
    %18 = vector.extract_strided_slice %11 {offsets = [0, 32], sizes = [2, 32], strides = [1, 1]} : vector<2x128xf32> to vector<2x32xf32>
    %19 = arith.negf %18 : vector<2x32xf32>
    %20 = math.exp %19 : vector<2x32xf32>
    %cst_11 = arith.constant 1.000000e+00 : f32
    %21 = vector.broadcast %cst_11 : f32 to vector<2x32xf32>
    %22 = arith.addf %21, %20 : vector<2x32xf32>
    %23 = arith.divf %21, %22 : vector<2x32xf32>
    %24 = vector.extract_strided_slice %11 {offsets = [0, 64], sizes = [2, 32], strides = [1, 1]} : vector<2x128xf32> to vector<2x32xf32>
    %25 = math.tanh %24 : vector<2x32xf32>
    %26 = vector.extract_strided_slice %11 {offsets = [0, 96], sizes = [2, 32], strides = [1, 1]} : vector<2x128xf32> to vector<2x32xf32>
    %27 = arith.negf %26 : vector<2x32xf32>
    %28 = math.exp %27 : vector<2x32xf32>
    %cst_12 = arith.constant 1.000000e+00 : f32
    %29 = vector.broadcast %cst_12 : f32 to vector<2x32xf32>
    %30 = arith.addf %29, %28 : vector<2x32xf32>
    %31 = arith.divf %29, %30 : vector<2x32xf32>
    %32 = arith.mulf %23, %8 : vector<2x32xf32>
    %33 = arith.mulf %17, %25 : vector<2x32xf32>
    %34 = arith.addf %32, %33 : vector<2x32xf32>
    %35 = math.tanh %34 : vector<2x32xf32>
    %36 = arith.mulf %31, %35 : vector<2x32xf32>
    %c0_13 = arith.constant 0 : index
    %c0_14 = arith.constant 0 : index
    %37 = vector.load %arg8[%c0_13, %c0_14] : memref<16x32xf32, #tpu.memory_space<vmem>>, vector<2x32xf32>
    tpu.vector_store %arg8[%c0_13, %c0_14], %36 {strides = array<i32>} : memref<16x32xf32, #tpu.memory_space<vmem>>, vector<2x32xf32>,
    %38 = vector.extract_strided_slice %5 {offsets = [2, 0], sizes = [2, 128], strides = [1, 1]} : vector<16x128xf32> to vector<2x128xf32>
    %cst_15 = arith.constant dense<0.000000e+00> : vector<2x128xf32>
    %39 = tpu.matmul %36, %6, %cst_15 {dimension_numbers = #tpu.dot_dimension_numbers<[1], [0], [0], [1], [0, 0, 1, 1], [], []>} : vector<2x32xf32>, vector<32x128xf32>, vector<2x128xf32> -> vector<2x128xf32>
    %40 = arith.addf %38, %39 : vector<2x128xf32>
    %41 = vector.extract_strided_slice %40 {offsets = [0, 0], sizes = [2, 32], strides = [1, 1]} : vector<2x128xf32> to vector<2x32xf32>
    %42 = arith.negf %41 : vector<2x32xf32>
    %43 = math.exp %42 : vector<2x32xf32>
    %cst_16 = arith.constant 1.000000e+00 : f32
    %44 = vector.broadcast %cst_16 : f32 to vector<2x32xf32>
    %45 = arith.addf %44, %43 : vector<2x32xf32>
    %46 = arith.divf %44, %45 : vector<2x32xf32>
    %47 = vector.extract_strided_slice %40 {offsets = [0, 32], sizes = [2, 32], strides = [1, 1]} : vector<2x128xf32> to vector<2x32xf32>
    %48 = arith.negf %47 : vector<2x32xf32>
    %49 = math.exp %48 : vector<2x32xf32>
    %cst_17 = arith.constant 1.000000e+00 : f32
    %50 = vector.broadcast %cst_17 : f32 to vector<2x32xf32>
    %51 = arith.addf %50, %49 : vector<2x32xf32>
    %52 = arith.divf %50, %51 : vector<2x32xf32>
    %53 = vector.extract_strided_slice %40 {offsets = [0, 64], sizes = [2, 32], strides = [1, 1]} : vector<2x128xf32> to vector<2x32xf32>
    %54 = math.tanh %53 : vector<2x32xf32>
    %55 = vector.extract_strided_slice %40 {offsets = [0, 96], sizes = [2, 32], strides = [1, 1]} : vector<2x128xf32> to vector<2x32xf32>
    %56 = arith.negf %55 : vector<2x32xf32>
    %57 = math.exp %56 : vector<2x32xf32>
    %cst_18 = arith.constant 1.000000e+00 : f32
    %58 = vector.broadcast %cst_18 : f32 to vector<2x32xf32>
    %59 = arith.addf %58, %57 : vector<2x32xf32>
    %60 = arith.divf %58, %59 : vector<2x32xf32>
    %61 = arith.mulf %52, %34 : vector<2x32xf32>
    %62 = arith.mulf %46, %54 : vector<2x32xf32>
    %63 = arith.addf %61, %62 : vector<2x32xf32>
    %64 = math.tanh %63 : vector<2x32xf32>
    %65 = arith.mulf %60, %64 : vector<2x32xf32>
    %c2 = arith.constant 2 : index
    %c0_19 = arith.constant 0 : index
    %66 = vector.load %arg8[%c2, %c0_19] : memref<16x32xf32, #tpu.memory_space<vmem>>, vector<2x32xf32>
    tpu.vector_store %arg8[%c2, %c0_19], %65 {strides = array<i32>} : memref<16x32xf32, #tpu.memory_space<vmem>>, vector<2x32xf32>,
    %67 = vector.extract_strided_slice %5 {offsets = [4, 0], sizes = [2, 128], strides = [1, 1]} : vector<16x128xf32> to vector<2x128xf32>
    %cst_20 = arith.constant dense<0.000000e+00> : vector<2x128xf32>
    %68 = tpu.matmul %65, %6, %cst_20 {dimension_numbers = #tpu.dot_dimension_numbers<[1], [0], [0], [1], [0, 0, 1, 1], [], []>} : vector<2x32xf32>, vector<32x128xf32>, vector<2x128xf32> -> vector<2x128xf32>
    %69 = arith.addf %67, %68 : vector<2x128xf32>
    %70 = vector.extract_strided_slice %69 {offsets = [0, 0], sizes = [2, 32], strides = [1, 1]} : vector<2x128xf32> to vector<2x32xf32>
    %71 = arith.negf %70 : vector<2x32xf32>
    %72 = math.exp %71 : vector<2x32xf32>
    %cst_21 = arith.constant 1.000000e+00 : f32
    %73 = vector.broadcast %cst_21 : f32 to vector<2x32xf32>
    %74 = arith.addf %73, %72 : vector<2x32xf32>
    %75 = arith.divf %73, %74 : vector<2x32xf32>
    %76 = vector.extract_strided_slice %69 {offsets = [0, 32], sizes = [2, 32], strides = [1, 1]} : vector<2x128xf32> to vector<2x32xf32>
    %77 = arith.negf %76 : vector<2x32xf32>
    %78 = math.exp %77 : vector<2x32xf32>
    %cst_22 = arith.constant 1.000000e+00 : f32
    %79 = vector.broadcast %cst_22 : f32 to vector<2x32xf32>
    %80 = arith.addf %79, %78 : vector<2x32xf32>
    %81 = arith.divf %79, %80 : vector<2x32xf32>
    %82 = vector.extract_strided_slice %69 {offsets = [0, 64], sizes = [2, 32], strides = [1, 1]} : vector<2x128xf32> to vector<2x32xf32>
    %83 = math.tanh %82 : vector<2x32xf32>
    %84 = vector.extract_strided_slice %69 {offsets = [0, 96], sizes = [2, 32], strides = [1, 1]} : vector<2x128xf32> to vector<2x32xf32>
    %85 = arith.negf %84 : vector<2x32xf32>
    %86 = math.exp %85 : vector<2x32xf32>
    %cst_23 = arith.constant 1.000000e+00 : f32
    %87 = vector.broadcast %cst_23 : f32 to vector<2x32xf32>
    %88 = arith.addf %87, %86 : vector<2x32xf32>
    %89 = arith.divf %87, %88 : vector<2x32xf32>
    %90 = arith.mulf %81, %63 : vector<2x32xf32>
    %91 = arith.mulf %75, %83 : vector<2x32xf32>
    %92 = arith.addf %90, %91 : vector<2x32xf32>
    %93 = math.tanh %92 : vector<2x32xf32>
    %94 = arith.mulf %89, %93 : vector<2x32xf32>
    %c4 = arith.constant 4 : index
    %c0_24 = arith.constant 0 : index
    %95 = vector.load %arg8[%c4, %c0_24] : memref<16x32xf32, #tpu.memory_space<vmem>>, vector<2x32xf32>
    tpu.vector_store %arg8[%c4, %c0_24], %94 {strides = array<i32>} : memref<16x32xf32, #tpu.memory_space<vmem>>, vector<2x32xf32>,
    %96 = vector.extract_strided_slice %5 {offsets = [6, 0], sizes = [2, 128], strides = [1, 1]} : vector<16x128xf32> to vector<2x128xf32>
    %cst_25 = arith.constant dense<0.000000e+00> : vector<2x128xf32>
    %97 = tpu.matmul %94, %6, %cst_25 {dimension_numbers = #tpu.dot_dimension_numbers<[1], [0], [0], [1], [0, 0, 1, 1], [], []>} : vector<2x32xf32>, vector<32x128xf32>, vector<2x128xf32> -> vector<2x128xf32>
    %98 = arith.addf %96, %97 : vector<2x128xf32>
    %99 = vector.extract_strided_slice %98 {offsets = [0, 0], sizes = [2, 32], strides = [1, 1]} : vector<2x128xf32> to vector<2x32xf32>
    %100 = arith.negf %99 : vector<2x32xf32>
    %101 = math.exp %100 : vector<2x32xf32>
    %cst_26 = arith.constant 1.000000e+00 : f32
    %102 = vector.broadcast %cst_26 : f32 to vector<2x32xf32>
    %103 = arith.addf %102, %101 : vector<2x32xf32>
    %104 = arith.divf %102, %103 : vector<2x32xf32>
    %105 = vector.extract_strided_slice %98 {offsets = [0, 32], sizes = [2, 32], strides = [1, 1]} : vector<2x128xf32> to vector<2x32xf32>
    %106 = arith.negf %105 : vector<2x32xf32>
    %107 = math.exp %106 : vector<2x32xf32>
    %cst_27 = arith.constant 1.000000e+00 : f32
    %108 = vector.broadcast %cst_27 : f32 to vector<2x32xf32>
    %109 = arith.addf %108, %107 : vector<2x32xf32>
    %110 = arith.divf %108, %109 : vector<2x32xf32>
    %111 = vector.extract_strided_slice %98 {offsets = [0, 64], sizes = [2, 32], strides = [1, 1]} : vector<2x128xf32> to vector<2x32xf32>
    %112 = math.tanh %111 : vector<2x32xf32>
    %113 = vector.extract_strided_slice %98 {offsets = [0, 96], sizes = [2, 32], strides = [1, 1]} : vector<2x128xf32> to vector<2x32xf32>
    %114 = arith.negf %113 : vector<2x32xf32>
    %115 = math.exp %114 : vector<2x32xf32>
    %cst_28 = arith.constant 1.000000e+00 : f32
    %116 = vector.broadcast %cst_28 : f32 to vector<2x32xf32>
    %117 = arith.addf %116, %115 : vector<2x32xf32>
    %118 = arith.divf %116, %117 : vector<2x32xf32>
    %119 = arith.mulf %110, %92 : vector<2x32xf32>
    %120 = arith.mulf %104, %112 : vector<2x32xf32>
    %121 = arith.addf %119, %120 : vector<2x32xf32>
    %122 = math.tanh %121 : vector<2x32xf32>
    %123 = arith.mulf %118, %122 : vector<2x32xf32>
    %c6 = arith.constant 6 : index
    %c0_29 = arith.constant 0 : index
    %124 = vector.load %arg8[%c6, %c0_29] : memref<16x32xf32, #tpu.memory_space<vmem>>, vector<2x32xf32>
    tpu.vector_store %arg8[%c6, %c0_29], %123 {strides = array<i32>} : memref<16x32xf32, #tpu.memory_space<vmem>>, vector<2x32xf32>,
    %125 = vector.extract_strided_slice %5 {offsets = [8, 0], sizes = [2, 128], strides = [1, 1]} : vector<16x128xf32> to vector<2x128xf32>
    %cst_30 = arith.constant dense<0.000000e+00> : vector<2x128xf32>
    %126 = tpu.matmul %123, %6, %cst_30 {dimension_numbers = #tpu.dot_dimension_numbers<[1], [0], [0], [1], [0, 0, 1, 1], [], []>} : vector<2x32xf32>, vector<32x128xf32>, vector<2x128xf32> -> vector<2x128xf32>
    %127 = arith.addf %125, %126 : vector<2x128xf32>
    %128 = vector.extract_strided_slice %127 {offsets = [0, 0], sizes = [2, 32], strides = [1, 1]} : vector<2x128xf32> to vector<2x32xf32>
    %129 = arith.negf %128 : vector<2x32xf32>
    %130 = math.exp %129 : vector<2x32xf32>
    %cst_31 = arith.constant 1.000000e+00 : f32
    %131 = vector.broadcast %cst_31 : f32 to vector<2x32xf32>
    %132 = arith.addf %131, %130 : vector<2x32xf32>
    %133 = arith.divf %131, %132 : vector<2x32xf32>
    %134 = vector.extract_strided_slice %127 {offsets = [0, 32], sizes = [2, 32], strides = [1, 1]} : vector<2x128xf32> to vector<2x32xf32>
    %135 = arith.negf %134 : vector<2x32xf32>
    %136 = math.exp %135 : vector<2x32xf32>
    %cst_32 = arith.constant 1.000000e+00 : f32
    %137 = vector.broadcast %cst_32 : f32 to vector<2x32xf32>
    %138 = arith.addf %137, %136 : vector<2x32xf32>
    %139 = arith.divf %137, %138 : vector<2x32xf32>
    %140 = vector.extract_strided_slice %127 {offsets = [0, 64], sizes = [2, 32], strides = [1, 1]} : vector<2x128xf32> to vector<2x32xf32>
    %141 = math.tanh %140 : vector<2x32xf32>
    %142 = vector.extract_strided_slice %127 {offsets = [0, 96], sizes = [2, 32], strides = [1, 1]} : vector<2x128xf32> to vector<2x32xf32>
    %143 = arith.negf %142 : vector<2x32xf32>
    %144 = math.exp %143 : vector<2x32xf32>
    %cst_33 = arith.constant 1.000000e+00 : f32
    %145 = vector.broadcast %cst_33 : f32 to vector<2x32xf32>
    %146 = arith.addf %145, %144 : vector<2x32xf32>
    %147 = arith.divf %145, %146 : vector<2x32xf32>
    %148 = arith.mulf %139, %121 : vector<2x32xf32>
    %149 = arith.mulf %133, %141 : vector<2x32xf32>
    %150 = arith.addf %148, %149 : vector<2x32xf32>
    %151 = math.tanh %150 : vector<2x32xf32>
    %152 = arith.mulf %147, %151 : vector<2x32xf32>
    %c8 = arith.constant 8 : index
    %c0_34 = arith.constant 0 : index
    %153 = vector.load %arg8[%c8, %c0_34] : memref<16x32xf32, #tpu.memory_space<vmem>>, vector<2x32xf32>
    tpu.vector_store %arg8[%c8, %c0_34], %152 {strides = array<i32>} : memref<16x32xf32, #tpu.memory_space<vmem>>, vector<2x32xf32>,
    %154 = vector.extract_strided_slice %5 {offsets = [10, 0], sizes = [2, 128], strides = [1, 1]} : vector<16x128xf32> to vector<2x128xf32>
    %cst_35 = arith.constant dense<0.000000e+00> : vector<2x128xf32>
    %155 = tpu.matmul %152, %6, %cst_35 {dimension_numbers = #tpu.dot_dimension_numbers<[1], [0], [0], [1], [0, 0, 1, 1], [], []>} : vector<2x32xf32>, vector<32x128xf32>, vector<2x128xf32> -> vector<2x128xf32>
    %156 = arith.addf %154, %155 : vector<2x128xf32>
    %157 = vector.extract_strided_slice %156 {offsets = [0, 0], sizes = [2, 32], strides = [1, 1]} : vector<2x128xf32> to vector<2x32xf32>
    %158 = arith.negf %157 : vector<2x32xf32>
    %159 = math.exp %158 : vector<2x32xf32>
    %cst_36 = arith.constant 1.000000e+00 : f32
    %160 = vector.broadcast %cst_36 : f32 to vector<2x32xf32>
    %161 = arith.addf %160, %159 : vector<2x32xf32>
    %162 = arith.divf %160, %161 : vector<2x32xf32>
    %163 = vector.extract_strided_slice %156 {offsets = [0, 32], sizes = [2, 32], strides = [1, 1]} : vector<2x128xf32> to vector<2x32xf32>
    %164 = arith.negf %163 : vector<2x32xf32>
    %165 = math.exp %164 : vector<2x32xf32>
    %cst_37 = arith.constant 1.000000e+00 : f32
    %166 = vector.broadcast %cst_37 : f32 to vector<2x32xf32>
    %167 = arith.addf %166, %165 : vector<2x32xf32>
    %168 = arith.divf %166, %167 : vector<2x32xf32>
    %169 = vector.extract_strided_slice %156 {offsets = [0, 64], sizes = [2, 32], strides = [1, 1]} : vector<2x128xf32> to vector<2x32xf32>
    %170 = math.tanh %169 : vector<2x32xf32>
    %171 = vector.extract_strided_slice %156 {offsets = [0, 96], sizes = [2, 32], strides = [1, 1]} : vector<2x128xf32> to vector<2x32xf32>
    %172 = arith.negf %171 : vector<2x32xf32>
    %173 = math.exp %172 : vector<2x32xf32>
    %cst_38 = arith.constant 1.000000e+00 : f32
    %174 = vector.broadcast %cst_38 : f32 to vector<2x32xf32>
    %175 = arith.addf %174, %173 : vector<2x32xf32>
    %176 = arith.divf %174, %175 : vector<2x32xf32>
    %177 = arith.mulf %168, %150 : vector<2x32xf32>
    %178 = arith.mulf %162, %170 : vector<2x32xf32>
    %179 = arith.addf %177, %178 : vector<2x32xf32>
    %180 = math.tanh %179 : vector<2x32xf32>
    %181 = arith.mulf %176, %180 : vector<2x32xf32>
    %c10 = arith.constant 10 : index
    %c0_39 = arith.constant 0 : index
    %182 = vector.load %arg8[%c10, %c0_39] : memref<16x32xf32, #tpu.memory_space<vmem>>, vector<2x32xf32>
    tpu.vector_store %arg8[%c10, %c0_39], %181 {strides = array<i32>} : memref<16x32xf32, #tpu.memory_space<vmem>>, vector<2x32xf32>,
    %183 = vector.extract_strided_slice %5 {offsets = [12, 0], sizes = [2, 128], strides = [1, 1]} : vector<16x128xf32> to vector<2x128xf32>
    %cst_40 = arith.constant dense<0.000000e+00> : vector<2x128xf32>
    %184 = tpu.matmul %181, %6, %cst_40 {dimension_numbers = #tpu.dot_dimension_numbers<[1], [0], [0], [1], [0, 0, 1, 1], [], []>} : vector<2x32xf32>, vector<32x128xf32>, vector<2x128xf32> -> vector<2x128xf32>
    %185 = arith.addf %183, %184 : vector<2x128xf32>
    %186 = vector.extract_strided_slice %185 {offsets = [0, 0], sizes = [2, 32], strides = [1, 1]} : vector<2x128xf32> to vector<2x32xf32>
    %187 = arith.negf %186 : vector<2x32xf32>
    %188 = math.exp %187 : vector<2x32xf32>
    %cst_41 = arith.constant 1.000000e+00 : f32
    %189 = vector.broadcast %cst_41 : f32 to vector<2x32xf32>
    %190 = arith.addf %189, %188 : vector<2x32xf32>
    %191 = arith.divf %189, %190 : vector<2x32xf32>
    %192 = vector.extract_strided_slice %185 {offsets = [0, 32], sizes = [2, 32], strides = [1, 1]} : vector<2x128xf32> to vector<2x32xf32>
    %193 = arith.negf %192 : vector<2x32xf32>
    %194 = math.exp %193 : vector<2x32xf32>
    %cst_42 = arith.constant 1.000000e+00 : f32
    %195 = vector.broadcast %cst_42 : f32 to vector<2x32xf32>
    %196 = arith.addf %195, %194 : vector<2x32xf32>
    %197 = arith.divf %195, %196 : vector<2x32xf32>
    %198 = vector.extract_strided_slice %185 {offsets = [0, 64], sizes = [2, 32], strides = [1, 1]} : vector<2x128xf32> to vector<2x32xf32>
    %199 = math.tanh %198 : vector<2x32xf32>
    %200 = vector.extract_strided_slice %185 {offsets = [0, 96], sizes = [2, 32], strides = [1, 1]} : vector<2x128xf32> to vector<2x32xf32>
    %201 = arith.negf %200 : vector<2x32xf32>
    %202 = math.exp %201 : vector<2x32xf32>
    %cst_43 = arith.constant 1.000000e+00 : f32
    %203 = vector.broadcast %cst_43 : f32 to vector<2x32xf32>
    %204 = arith.addf %203, %202 : vector<2x32xf32>
    %205 = arith.divf %203, %204 : vector<2x32xf32>
    %206 = arith.mulf %197, %179 : vector<2x32xf32>
    %207 = arith.mulf %191, %199 : vector<2x32xf32>
    %208 = arith.addf %206, %207 : vector<2x32xf32>
    %209 = math.tanh %208 : vector<2x32xf32>
    %210 = arith.mulf %205, %209 : vector<2x32xf32>
    %c12 = arith.constant 12 : index
    %c0_44 = arith.constant 0 : index
    %211 = vector.load %arg8[%c12, %c0_44] : memref<16x32xf32, #tpu.memory_space<vmem>>, vector<2x32xf32>
    tpu.vector_store %arg8[%c12, %c0_44], %210 {strides = array<i32>} : memref<16x32xf32, #tpu.memory_space<vmem>>, vector<2x32xf32>,
    %212 = vector.extract_strided_slice %5 {offsets = [14, 0], sizes = [2, 128], strides = [1, 1]} : vector<16x128xf32> to vector<2x128xf32>
    %cst_45 = arith.constant dense<0.000000e+00> : vector<2x128xf32>
    %213 = tpu.matmul %210, %6, %cst_45 {dimension_numbers = #tpu.dot_dimension_numbers<[1], [0], [0], [1], [0, 0, 1, 1], [], []>} : vector<2x32xf32>, vector<32x128xf32>, vector<2x128xf32> -> vector<2x128xf32>
    %214 = arith.addf %212, %213 : vector<2x128xf32>
    %215 = vector.extract_strided_slice %214 {offsets = [0, 0], sizes = [2, 32], strides = [1, 1]} : vector<2x128xf32> to vector<2x32xf32>
    %216 = arith.negf %215 : vector<2x32xf32>
    %217 = math.exp %216 : vector<2x32xf32>
    %cst_46 = arith.constant 1.000000e+00 : f32
    %218 = vector.broadcast %cst_46 : f32 to vector<2x32xf32>
    %219 = arith.addf %218, %217 : vector<2x32xf32>
    %220 = arith.divf %218, %219 : vector<2x32xf32>
    %221 = vector.extract_strided_slice %214 {offsets = [0, 32], sizes = [2, 32], strides = [1, 1]} : vector<2x128xf32> to vector<2x32xf32>
    %222 = arith.negf %221 : vector<2x32xf32>
    %223 = math.exp %222 : vector<2x32xf32>
    %cst_47 = arith.constant 1.000000e+00 : f32
    %224 = vector.broadcast %cst_47 : f32 to vector<2x32xf32>
    %225 = arith.addf %224, %223 : vector<2x32xf32>
    %226 = arith.divf %224, %225 : vector<2x32xf32>
    %227 = vector.extract_strided_slice %214 {offsets = [0, 64], sizes = [2, 32], strides = [1, 1]} : vector<2x128xf32> to vector<2x32xf32>
    %228 = math.tanh %227 : vector<2x32xf32>
    %229 = vector.extract_strided_slice %214 {offsets = [0, 96], sizes = [2, 32], strides = [1, 1]} : vector<2x128xf32> to vector<2x32xf32>
    %230 = arith.negf %229 : vector<2x32xf32>
    %231 = math.exp %230 : vector<2x32xf32>
    %cst_48 = arith.constant 1.000000e+00 : f32
    %232 = vector.broadcast %cst_48 : f32 to vector<2x32xf32>
    %233 = arith.addf %232, %231 : vector<2x32xf32>
    %234 = arith.divf %232, %233 : vector<2x32xf32>
    %235 = arith.mulf %226, %208 : vector<2x32xf32>
    %236 = arith.mulf %220, %228 : vector<2x32xf32>
    %237 = arith.addf %235, %236 : vector<2x32xf32>
    %238 = math.tanh %237 : vector<2x32xf32>
    %239 = arith.mulf %234, %238 : vector<2x32xf32>
    %c14 = arith.constant 14 : index
    %c0_49 = arith.constant 0 : index
    %240 = vector.load %arg8[%c14, %c0_49] : memref<16x32xf32, #tpu.memory_space<vmem>>, vector<2x32xf32>
    tpu.vector_store %arg8[%c14, %c0_49], %239 {strides = array<i32>} : memref<16x32xf32, #tpu.memory_space<vmem>>, vector<2x32xf32>,
    %cst_50 = arith.constant 0.000000e+00 : f32
    %241 = vector.broadcast %cst_50 : f32 to vector<2x8xf32>
    %c0_51 = arith.constant 0 : index
    %c0_52 = arith.constant 0 : index
    %242 = tpu.strided_load %arg8[%c0_51, %c0_52] {strides = array<i32: 8, 1>} : memref<16x32xf32, #tpu.memory_space<vmem>>, vector<2x32xf32>
    %c0_53 = arith.constant 0 : index
    %c0_54 = arith.constant 0 : index
    %c0_55 = arith.constant 0 : index
    %243 = vector.load %arg5[%c0_53, %c0_54, %c0_55] : memref<8x32x8xf32, #tpu.memory_space<vmem>>, vector<1x32x8xf32>
    %244 = vector.shape_cast %243 : vector<1x32x8xf32> to vector<32x8xf32>
    %cst_56 = arith.constant dense<0.000000e+00> : vector<2x8xf32>
    %245 = tpu.matmul %242, %244, %cst_56 {dimension_numbers = #tpu.dot_dimension_numbers<[1], [0], [0], [1], [0, 0, 1, 1], [], []>} : vector<2x32xf32>, vector<32x8xf32>, vector<2x8xf32> -> vector<2x8xf32>
    %246 = arith.addf %241, %245 : vector<2x8xf32>
    %c1 = arith.constant 1 : index
    %c0_57 = arith.constant 0 : index
    %247 = tpu.strided_load %arg8[%c1, %c0_57] {strides = array<i32: 8, 1>} : memref<16x32xf32, #tpu.memory_space<vmem>>, vector<2x32xf32>
    %c1_58 = arith.constant 1 : index
    %c0_59 = arith.constant 0 : index
    %c0_60 = arith.constant 0 : index
    %248 = vector.load %arg5[%c1_58, %c0_59, %c0_60] : memref<8x32x8xf32, #tpu.memory_space<vmem>>, vector<1x32x8xf32>
    %249 = vector.shape_cast %248 : vector<1x32x8xf32> to vector<32x8xf32>
    %cst_61 = arith.constant dense<0.000000e+00> : vector<2x8xf32>
    %250 = tpu.matmul %247, %249, %cst_61 {dimension_numbers = #tpu.dot_dimension_numbers<[1], [0], [0], [1], [0, 0, 1, 1], [], []>} : vector<2x32xf32>, vector<32x8xf32>, vector<2x8xf32> -> vector<2x8xf32>
    %251 = arith.addf %246, %250 : vector<2x8xf32>
    %c2_62 = arith.constant 2 : index
    %c0_63 = arith.constant 0 : index
    %252 = tpu.strided_load %arg8[%c2_62, %c0_63] {strides = array<i32: 8, 1>} : memref<16x32xf32, #tpu.memory_space<vmem>>, vector<2x32xf32>
    %c2_64 = arith.constant 2 : index
    %c0_65 = arith.constant 0 : index
    %c0_66 = arith.constant 0 : index
    %253 = vector.load %arg5[%c2_64, %c0_65, %c0_66] : memref<8x32x8xf32, #tpu.memory_space<vmem>>, vector<1x32x8xf32>
    %254 = vector.shape_cast %253 : vector<1x32x8xf32> to vector<32x8xf32>
    %cst_67 = arith.constant dense<0.000000e+00> : vector<2x8xf32>
    %255 = tpu.matmul %252, %254, %cst_67 {dimension_numbers = #tpu.dot_dimension_numbers<[1], [0], [0], [1], [0, 0, 1, 1], [], []>} : vector<2x32xf32>, vector<32x8xf32>, vector<2x8xf32> -> vector<2x8xf32>
    %256 = arith.addf %251, %255 : vector<2x8xf32>
    %c3 = arith.constant 3 : index
    %c0_68 = arith.constant 0 : index
    %257 = tpu.strided_load %arg8[%c3, %c0_68] {strides = array<i32: 8, 1>} : memref<16x32xf32, #tpu.memory_space<vmem>>, vector<2x32xf32>
    %c3_69 = arith.constant 3 : index
    %c0_70 = arith.constant 0 : index
    %c0_71 = arith.constant 0 : index
    %258 = vector.load %arg5[%c3_69, %c0_70, %c0_71] : memref<8x32x8xf32, #tpu.memory_space<vmem>>, vector<1x32x8xf32>
    %259 = vector.shape_cast %258 : vector<1x32x8xf32> to vector<32x8xf32>
    %cst_72 = arith.constant dense<0.000000e+00> : vector<2x8xf32>
    %260 = tpu.matmul %257, %259, %cst_72 {dimension_numbers = #tpu.dot_dimension_numbers<[1], [0], [0], [1], [0, 0, 1, 1], [], []>} : vector<2x32xf32>, vector<32x8xf32>, vector<2x8xf32> -> vector<2x8xf32>
    %261 = arith.addf %256, %260 : vector<2x8xf32>
    %c4_73 = arith.constant 4 : index
    %c0_74 = arith.constant 0 : index
    %262 = tpu.strided_load %arg8[%c4_73, %c0_74] {strides = array<i32: 8, 1>} : memref<16x32xf32, #tpu.memory_space<vmem>>, vector<2x32xf32>
    %c4_75 = arith.constant 4 : index
    %c0_76 = arith.constant 0 : index
    %c0_77 = arith.constant 0 : index
    %263 = vector.load %arg5[%c4_75, %c0_76, %c0_77] : memref<8x32x8xf32, #tpu.memory_space<vmem>>, vector<1x32x8xf32>
    %264 = vector.shape_cast %263 : vector<1x32x8xf32> to vector<32x8xf32>
    %cst_78 = arith.constant dense<0.000000e+00> : vector<2x8xf32>
    %265 = tpu.matmul %262, %264, %cst_78 {dimension_numbers = #tpu.dot_dimension_numbers<[1], [0], [0], [1], [0, 0, 1, 1], [], []>} : vector<2x32xf32>, vector<32x8xf32>, vector<2x8xf32> -> vector<2x8xf32>
    %266 = arith.addf %261, %265 : vector<2x8xf32>
    %c5 = arith.constant 5 : index
    %c0_79 = arith.constant 0 : index
    %267 = tpu.strided_load %arg8[%c5, %c0_79] {strides = array<i32: 8, 1>} : memref<16x32xf32, #tpu.memory_space<vmem>>, vector<2x32xf32>
    %c5_80 = arith.constant 5 : index
    %c0_81 = arith.constant 0 : index
    %c0_82 = arith.constant 0 : index
    %268 = vector.load %arg5[%c5_80, %c0_81, %c0_82] : memref<8x32x8xf32, #tpu.memory_space<vmem>>, vector<1x32x8xf32>
    %269 = vector.shape_cast %268 : vector<1x32x8xf32> to vector<32x8xf32>
    %cst_83 = arith.constant dense<0.000000e+00> : vector<2x8xf32>
    %270 = tpu.matmul %267, %269, %cst_83 {dimension_numbers = #tpu.dot_dimension_numbers<[1], [0], [0], [1], [0, 0, 1, 1], [], []>} : vector<2x32xf32>, vector<32x8xf32>, vector<2x8xf32> -> vector<2x8xf32>
    %271 = arith.addf %266, %270 : vector<2x8xf32>
    %c6_84 = arith.constant 6 : index
    %c0_85 = arith.constant 0 : index
    %272 = tpu.strided_load %arg8[%c6_84, %c0_85] {strides = array<i32: 8, 1>} : memref<16x32xf32, #tpu.memory_space<vmem>>, vector<2x32xf32>
    %c6_86 = arith.constant 6 : index
    %c0_87 = arith.constant 0 : index
    %c0_88 = arith.constant 0 : index
    %273 = vector.load %arg5[%c6_86, %c0_87, %c0_88] : memref<8x32x8xf32, #tpu.memory_space<vmem>>, vector<1x32x8xf32>
    %274 = vector.shape_cast %273 : vector<1x32x8xf32> to vector<32x8xf32>
    %cst_89 = arith.constant dense<0.000000e+00> : vector<2x8xf32>
    %275 = tpu.matmul %272, %274, %cst_89 {dimension_numbers = #tpu.dot_dimension_numbers<[1], [0], [0], [1], [0, 0, 1, 1], [], []>} : vector<2x32xf32>, vector<32x8xf32>, vector<2x8xf32> -> vector<2x8xf32>
    %276 = arith.addf %271, %275 : vector<2x8xf32>
    %c7 = arith.constant 7 : index
    %c0_90 = arith.constant 0 : index
    %277 = tpu.strided_load %arg8[%c7, %c0_90] {strides = array<i32: 8, 1>} : memref<16x32xf32, #tpu.memory_space<vmem>>, vector<2x32xf32>
    %c7_91 = arith.constant 7 : index
    %c0_92 = arith.constant 0 : index
    %c0_93 = arith.constant 0 : index
    %278 = vector.load %arg5[%c7_91, %c0_92, %c0_93] : memref<8x32x8xf32, #tpu.memory_space<vmem>>, vector<1x32x8xf32>
    %279 = vector.shape_cast %278 : vector<1x32x8xf32> to vector<32x8xf32>
    %cst_94 = arith.constant dense<0.000000e+00> : vector<2x8xf32>
    %280 = tpu.matmul %277, %279, %cst_94 {dimension_numbers = #tpu.dot_dimension_numbers<[1], [0], [0], [1], [0, 0, 1, 1], [], []>} : vector<2x32xf32>, vector<32x8xf32>, vector<2x8xf32> -> vector<2x8xf32>
    %281 = arith.addf %276, %280 : vector<2x8xf32>
    %c0_95 = arith.constant 0 : index
    %c0_96 = arith.constant 0 : index
    %282 = vector.load %arg6[%c0_95, %c0_96] : memref<1x8xf32, #tpu.memory_space<vmem>>, vector<1x8xf32>
    %283 = vector.broadcast %282 : vector<1x8xf32> to vector<2x8xf32>
    %284 = arith.addf %281, %283 : vector<2x8xf32>
    %c0_97 = arith.constant 0 : index
    %c0_98 = arith.constant 0 : index
    %285 = vector.load %arg7[%c0_97, %c0_98] : memref<2x8xf32, #tpu.memory_space<vmem>>, vector<2x8xf32>
    tpu.vector_store %arg7[%c0_97, %c0_98], %284 {strides = array<i32>} : memref<2x8xf32, #tpu.memory_space<vmem>>, vector<2x8xf32>,
    return
  }
  func.func @transform_0(%arg0: i32) -> (i32, i32) {
    %c0_i32 = arith.constant 0 : i32
    %c0_i32_0 = arith.constant 0 : i32
    %c0_i32_1 = arith.constant 0 : i32
    return %c0_i32, %c0_i32_0 : i32, i32
  }
  func.func @transform_1(%arg0: i32) -> (i32, i32) {
    %c0_i32 = arith.constant 0 : i32
    %c0_i32_0 = arith.constant 0 : i32
    %c0_i32_1 = arith.constant 0 : i32
    return %c0_i32, %c0_i32_0 : i32, i32
  }
  func.func @transform_2(%arg0: i32) -> (i32, i32) {
    %c0_i32 = arith.constant 0 : i32
    %c0_i32_0 = arith.constant 0 : i32
    %c0_i32_1 = arith.constant 0 : i32
    return %c0_i32, %c0_i32_0 : i32, i32
  }
  func.func @transform_3(%arg0: i32) -> (i32, i32) {
    %c0_i32 = arith.constant 0 : i32
    %c0_i32_0 = arith.constant 0 : i32
    %c0_i32_1 = arith.constant 0 : i32
    return %c0_i32, %c0_i32_0 : i32, i32
  }
  func.func @transform_4(%arg0: i32) -> (i32, i32, i32) {
    %c0_i32 = arith.constant 0 : i32
    %c0_i32_0 = arith.constant 0 : i32
    %c0_i32_1 = arith.constant 0 : i32
    %c0_i32_2 = arith.constant 0 : i32
    return %c0_i32, %c0_i32_0, %c0_i32_1 : i32, i32, i32
  }
  func.func @transform_5(%arg0: i32) -> (i32, i32) {
    %c0_i32 = arith.constant 0 : i32
    %c0_i32_0 = arith.constant 0 : i32
    %c0_i32_1 = arith.constant 0 : i32
    return %c0_i32, %c0_i32_0 : i32, i32
  }
  func.func @transform_6(%arg0: i32) -> (i32, i32) {
    %c0_i32 = arith.constant 0 : i32
    %c0_i32_0 = arith.constant 0 : i32
    %c0_i32_1 = arith.constant 0 : i32
    return %c0_i32, %c0_i32_0 : i32, i32
  }
}

</mosaic_0001>

<llo_original>
// kernel: jarvis_lstm_forward.1
$region0: #{jarvis_lstm_forward.1}
  #allocation0 [shape = 'u32[]', space=smem, size = 0x4, offset = 0x4, fixed_abs, tag = 'smem constant byte address 0x4 - core index']
  #allocation1 [shape = 'u32[72,128]{1,0:T(1,128)}', space=vmem, size = 0x9000, scoped, tag = 'internal scratch']
  #allocation2 [shape = 'f32[16,32]{1,0:T(8,128)}', space=vmem, size = 0x2000, scoped, tag = 'scratch operand']
  %s0 = inlined_call_operand.vmem [shape: f32[16,4], index: 0, kind: input, shape index: {}]
  %s1 = inlined_call_operand.vmem [shape: f32[4,128], index: 1, kind: input, shape index: {}]
  %s2 = inlined_call_operand.vmem [shape: f32[32,128], index: 2, kind: input, shape index: {}]
  %s3 = inlined_call_operand.vmem [shape: f32[1,128], index: 3, kind: input, shape index: {}]
  %s4 = inlined_call_operand.vmem [shape: f32[8,32,8], index: 4, kind: input, shape index: {}]
  %s5 = inlined_call_operand.vmem [shape: f32[1,8], index: 5, kind: input, shape index: {}]
  %s6 = inlined_call_operand.hbm [shape: f32[2,8], index: 6, kind: output, shape index: {}]
  %s7 = sld [smem:[#allocation0]]
  $region34: #{jarvis_lstm_forward.1} parent=0
    _
  %s9 = ssub.s32 1, %s7
  %s10 = scalar_select 0, %s9, %s7
  $region1: #{jarvis_lstm_forward.1} parent=0
    #allocation3 [shape = 'u8[1024]{0}', space=vmem, size = 0x400, scoped, tag = 'output window, operand 0, single buffered']
    #allocation4 [shape = 's32[1]{0}', space=sflag, size = 0x4, scoped, tag = 'scoped memory for jarvis_lstm_forward.1']
    %11 = vsyncpa [#allocation4], 0
    // Predicated region
    $region2: #{jarvis_lstm_forward.1} parent=1 // pred_check
      _
    $region3: #{jarvis_lstm_forward.1} parent=1 // pred_check_branch
      %13 = sbr.rel (0) target = $region5
    $region4: #{jarvis_lstm_forward.1} parent=1 // pred_region
      _
    $region5: #{jarvis_lstm_forward.1} parent=1 // pred_fallthru
      _
    // Predicated region
    $region6: #{jarvis_lstm_forward.1} parent=1 // pred_check
      _
    $region7: #{jarvis_lstm_forward.1} parent=1 // pred_check_branch
      %15 = sbr.rel (0) target = $region9
    $region8: #{jarvis_lstm_forward.1} parent=1 // pred_region
      _
    $region9: #{jarvis_lstm_forward.1} parent=1 // pred_fallthru
      _
    // Predicated region
    $region10: #{jarvis_lstm_forward.1} parent=1 // pred_check
      _
    $region11: #{jarvis_lstm_forward.1} parent=1 // pred_check_branch
      %17 = sbr.rel (0) target = $region13
    $region12: #{jarvis_lstm_forward.1} parent=1 // pred_region
      _
    $region13: #{jarvis_lstm_forward.1} parent=1 // pred_fallthru
      _
    // Predicated region
    $region14: #{jarvis_lstm_forward.1} parent=1 // pred_check
      _
    $region15: #{jarvis_lstm_forward.1} parent=1 // pred_check_branch
      %19 = sbr.rel (0) target = $region17
    $region16: #{jarvis_lstm_forward.1} parent=1 // pred_region
      _
    $region17: #{jarvis_lstm_forward.1} parent=1 // pred_fallthru
      _
    // Predicated region
    $region18: #{jarvis_lstm_forward.1} parent=1 // pred_check
      _
    $region19: #{jarvis_lstm_forward.1} parent=1 // pred_check_branch
      %21 = sbr.rel (0) target = $region21
    $region20: #{jarvis_lstm_forward.1} parent=1 // pred_region
      _
    $region21: #{jarvis_lstm_forward.1} parent=1 // pred_fallthru
      _
    // Predicated region
    $region22: #{jarvis_lstm_forward.1} parent=1 // pred_check
      _
    $region23: #{jarvis_lstm_forward.1} parent=1 // pred_check_branch
      %23 = sbr.rel (0) target = $region25
    $region24: #{jarvis_lstm_forward.1} parent=1 // pred_region
      _
    $region25: #{jarvis_lstm_forward.1} parent=1 // pred_fallthru
      _
    %v24 = vld [vmem:[%s0] sm:$0xff]
    %v25 = vld [vmem:[%s0 + $0x8] sm:$0xff]
    %v26 = vld [vmem:[%s1] sm:$0xf]
    %v27 = vld [vmem:[%s3] sm:$0x1]
    %v29 = vperm.slane %v27, 0
    %vm31 = vcmask 31744
    %v33 = vsel %vm31, %v24, 0
    %v36 = vsel %vm31, %v25, 0
    %vm38 = vcmask 1043456
    %v40 = vsel %vm38, %v26, 0
    %42 = vmatpush.msra.mxu0 0.0
    %43 = vmatpush.msra.mxu0 0.0
    %44 = vmatpush.msra.mxu0 0.0
    %45 = vmatpush.msra.mxu0 0.0
    %46 = vmatpush.msra.mxu0 0.0
    %47 = vmatpush.msra.mxu0 0.0
    %48 = vmatpush.msra.mxu0 0.0
    %49 = vmatpush.msra.mxu0 0.0
    %50 = vmatpush.msra.mxu0 0.0
    %51 = vmatpush.msra.mxu0 0.0
    %52 = vmatpush.msra.mxu0 0.0
    %53 = vmatpush.msra.mxu0 0.0
    %54 = vmatpush.msra.mxu0 0.0
    %55 = vmatpush.msra.mxu0 0.0
    %56 = vmatpush.msra.mxu0 0.0
    %57 = vmatpush.msra.mxu0 %v40
    %58 = vmatmul.f32.gmra.mxu0 %v33
    %v59 = vpop.f32.mrf.mxu0
    %v60 = vadd.f32 %v29, %v59
    %61 = vmatmul.f32.gmra.mxu0 %v36
    %v62 = vpop.f32.mrf.mxu0
    %v63 = vadd.f32 %v29, %v62
    %64 = vdwg.mxu0
    %v65 = vld [vmem:[%s2] sm:$0xff]
    %v66 = vld [vmem:[%s2 + $0x8] sm:$0xff]
    %v67 = vld [vmem:[%s2 + $0x10] sm:$0xff]
    %v68 = vld [vmem:[%s2 + $0x18] sm:$0xff]
    %vm69 = vcmask 261120
    %v71 = vsel %vm69, 0.0, 0
    %73 = vmatpush.msra.mxu0 0.0
    %74 = vmatpush.msra.mxu0 0.0
    %75 = vmatpush.msra.mxu0 0.0
    %76 = vmatpush.msra.mxu0 0.0
    %77 = vmatpush.msra.mxu0 0.0
    %78 = vmatpush.msra.mxu0 0.0
    %79 = vmatpush.msra.mxu0 0.0
    %80 = vmatpush.msra.mxu0 0.0
    %81 = vmatpush.msra.mxu0 0.0
    %82 = vmatpush.msra.mxu0 0.0
    %83 = vmatpush.msra.mxu0 0.0
    %84 = vmatpush.msra.mxu0 0.0
    %85 = vmatpush.msra.mxu0 %v68
    %86 = vmatpush.msra.mxu0 %v67
    %87 = vmatpush.msra.mxu0 %v66
    %88 = vmatpush.msra.mxu0 %v65
    %89 = vmatmul.f32.gmra.mxu0 %v71
    %v90 = vpop.f32.mrf.mxu0
    %v91 = vadd.f32 0.0, %v90
    %92 = vdwg.mxu0
    %v93 = vadd.f32 %v60, %v91
    %v94 = vxor.u32 %v93, 2147483648
    %v95 = vmul.f32 %v94, 1.442695
    %v96 = vpow.pop %v95
    %v97 = vadd.f32 %v96, 1.0
    %v98 = vrcp.pop %v97
    %v99 = vmul.f32 %v97, %v98
    %v100 = vsub.f32 1.0, %v99
    %v101 = vmul.f32 %v98, %v100
    %v102 = vadd.f32 %v98, %v101
    %vm103 = vweird.f32 %v97
    %vm104 = vweird.f32 %v98
    %vm105 = vmor %vm103, %vm104
    %v106 = vsel %vm105, %v98, %v102
    %v107 = vand.u32 2147483647, %v97
    %vm108 = vcmp.eq.f32.partialorder %v107, 8.507059e+37
    %v109 = vand.u32 %v97, 2147483648
    %v110 = vor.u32 1.1754944e-38, %v109
    %v111 = vsel %vm108, %v110, %v106
    %v112 = vmul.f32 1.0, %v111
    %v113 = vtanh.pop %v93
    %v114 = vmul.f32 %v112, 0.0
    %116 = vrot.lane.b32.xlu0 %v113, 64
    %v117 = vpop.permute.xlu0 %116
    %v119 = vmul.f32 %v112, %v117
    %121 = vrot.lane.b32.xlu0 %v119, 32
    %v122 = vpop.permute.xlu0 %121
    %v124 = vadd.f32 %v114, %v122
    %v125 = vtanh.pop %v124
    %127 = vrot.lane.b32.xlu0 %v125, 64
    %v128 = vpop.permute.xlu0 %127
    %v130 = vmul.f32 %v112, %v128
    %132 = vrot.lane.b32.xlu0 %v130, 32
    %v133 = vpop.permute.xlu0 %132
    %vm135 = vcmask 254976
    %136 = vst.msk [vmem:[#allocation2] sm:$0x3] %vm135, %v133
    %v137 = vsel %vm69, %v133, 0
    %139 = vmatpush.msra.mxu0 0.0
    %140 = vmatpush.msra.mxu0 0.0
    %141 = vmatpush.msra.mxu0 0.0
    %142 = vmatpush.msra.mxu0 0.0
    %143 = vmatpush.msra.mxu0 0.0
    %144 = vmatpush.msra.mxu0 0.0
    %145 = vmatpush.msra.mxu0 0.0
    %146 = vmatpush.msra.mxu0 0.0
    %147 = vmatpush.msra.mxu0 0.0
    %148 = vmatpush.msra.mxu0 0.0
    %149 = vmatpush.msra.mxu0 0.0
    %150 = vmatpush.msra.mxu0 0.0
    %151 = vmatpush.msra.mxu0 %v68
    %152 = vmatpush.msra.mxu0 %v67
    %153 = vmatpush.msra.mxu0 %v66
    %154 = vmatpush.msra.mxu0 %v65
    %155 = vmatmul.f32.gmra.mxu0 %v137
    %v156 = vpop.f32.mrf.mxu0
    %v157 = vadd.f32 0.0, %v156
    %158 = vdwg.mxu0
    %v160 = vrot.slane %v157, 6
    %v162 = vadd.f32 %v60, %v160
    %v163 = vxor.u32 %v162, 2147483648
    %v164 = vmul.f32 %v163, 1.442695
    %v165 = vpow.pop %v164
    %v166 = vadd.f32 %v165, 1.0
    %v167 = vrcp.pop %v166
    %v168 = vmul.f32 %v166, %v167
    %v169 = vsub.f32 1.0, %v168
    %v170 = vmul.f32 %v167, %v169
    %v171 = vadd.f32 %v167, %v170
    %vm172 = vweird.f32 %v166
    %vm173 = vweird.f32 %v167
    %vm174 = vmor %vm172, %vm173
    %v175 = vsel %vm174, %v167, %v171
    %v176 = vand.u32 2147483647, %v166
    %vm177 = vcmp.eq.f32.partialorder %v176, 8.507059e+37
    %v178 = vand.u32 %v166, 2147483648
    %v179 = vor.u32 1.1754944e-38, %v178
    %v180 = vsel %vm177, %v179, %v175
    %v181 = vmul.f32 1.0, %v180
    %v182 = vtanh.pop %v162
    %v184 = vrot.slane %v124, 6
    %v186 = vmul.f32 %v181, %v184
    %188 = vrot.lane.b32.xlu0 %v182, 64
    %v189 = vpop.permute.xlu0 %188
    %v191 = vmul.f32 %v181, %v189
    %193 = vrot.lane.b32.xlu0 %v191, 32
    %v194 = vpop.permute.xlu0 %193
    %v196 = vadd.f32 %v186, %v194
    %v197 = vtanh.pop %v196
    %199 = vrot.lane.b32.xlu0 %v197, 64
    %v200 = vpop.permute.xlu0 %199
    %v202 = vmul.f32 %v181, %v200
    %204 = vrot.lane.b32.xlu0 %v202, 32
    %v205 = vpop.permute.xlu0 %204
    %vm207 = vcmask 257026
    %208 = vst.msk [vmem:[#allocation2] sm:$0xc] %vm207, %v205
    %v209 = vrot.slane %v202, 2
    %210 = vrot.lane.b32.xlu0 %v209, 32
    %v211 = vpop.permute.xlu0 %210
    %v212 = vsel %vm69, %v211, 0
    %214 = vmatpush.msra.mxu0 0.0
    %215 = vmatpush.msra.mxu0 0.0
    %216 = vmatpush.msra.mxu0 0.0
    %217 = vmatpush.msra.mxu0 0.0
    %218 = vmatpush.msra.mxu0 0.0
    %219 = vmatpush.msra.mxu0 0.0
    %220 = vmatpush.msra.mxu0 0.0
    %221 = vmatpush.msra.mxu0 0.0
    %222 = vmatpush.msra.mxu0 0.0
    %223 = vmatpush.msra.mxu0 0.0
    %224 = vmatpush.msra.mxu0 0.0
    %225 = vmatpush.msra.mxu0 0.0
    %226 = vmatpush.msra.mxu0 %v68
    %227 = vmatpush.msra.mxu0 %v67
    %228 = vmatpush.msra.mxu0 %v66
    %229 = vmatpush.msra.mxu0 %v65
    %230 = vmatmul.f32.gmra.mxu0 %v212
    %v231 = vpop.f32.mrf.mxu0
    %v232 = vadd.f32 0.0, %v231
    %233 = vdwg.mxu0
    %v235 = vrot.slane %v232, 4
    %v237 = vadd.f32 %v60, %v235
    %v238 = vxor.u32 %v237, 2147483648
    %v239 = vmul.f32 %v238, 1.442695
    %v240 = vpow.pop %v239
    %v241 = vadd.f32 %v240, 1.0
    %v242 = vrcp.pop %v241
    %v243 = vmul.f32 %v241, %v242
    %v244 = vsub.f32 1.0, %v243
    %v245 = vmul.f32 %v242, %v244
    %v246 = vadd.f32 %v242, %v245
    %vm247 = vweird.f32 %v241
    %vm248 = vweird.f32 %v242
    %vm249 = vmor %vm247, %vm248
    %v250 = vsel %vm249, %v242, %v246
    %v251 = vand.u32 2147483647, %v241
    %vm252 = vcmp.eq.f32.partialorder %v251, 8.507059e+37
    %v253 = vand.u32 %v241, 2147483648
    %v254 = vor.u32 1.1754944e-38, %v253
    %v255 = vsel %vm252, %v254, %v250
    %v256 = vmul.f32 1.0, %v255
    %v257 = vtanh.pop %v237
    %v259 = vrot.slane %v196, 6
    %v261 = vmul.f32 %v256, %v259
    %263 = vrot.lane.b32.xlu0 %v257, 64
    %v264 = vpop.permute.xlu0 %263
    %v266 = vmul.f32 %v256, %v264
    %268 = vrot.lane.b32.xlu0 %v266, 32
    %v269 = vpop.permute.xlu0 %268
    %v271 = vadd.f32 %v261, %v269
    %v272 = vtanh.pop %v271
    %274 = vrot.lane.b32.xlu0 %v272, 64
    %v275 = vpop.permute.xlu0 %274
    %v277 = vmul.f32 %v256, %v275
    %279 = vrot.lane.b32.xlu0 %v277, 32
    %v280 = vpop.permute.xlu0 %279
    %vm282 = vcmask 259076
    %283 = vst.msk [vmem:[#allocation2] sm:$0x30] %vm282, %v280
    %v284 = vrot.slane %v277, 4
    %285 = vrot.lane.b32.xlu0 %v284, 32
    %v286 = vpop.permute.xlu0 %285
    %v287 = vsel %vm69, %v286, 0
    %289 = vmatpush.msra.mxu0 0.0
    %290 = vmatpush.msra.mxu0 0.0
    %291 = vmatpush.msra.mxu0 0.0
    %292 = vmatpush.msra.mxu0 0.0
    %293 = vmatpush.msra.mxu0 0.0
    %294 = vmatpush.msra.mxu0 0.0
    %295 = vmatpush.msra.mxu0 0.0
    %296 = vmatpush.msra.mxu0 0.0
    %297 = vmatpush.msra.mxu0 0.0
    %298 = vmatpush.msra.mxu0 0.0
    %299 = vmatpush.msra.mxu0 0.0
    %300 = vmatpush.msra.mxu0 0.0
    %301 = vmatpush.msra.mxu0 %v68
    %302 = vmatpush.msra.mxu0 %v67
    %303 = vmatpush.msra.mxu0 %v66
    %304 = vmatpush.msra.mxu0 %v65
    %305 = vmatmul.f32.gmra.mxu0 %v287
    %v306 = vpop.f32.mrf.mxu0
    %v307 = vadd.f32 0.0, %v306
    %308 = vdwg.mxu0
    %v310 = vrot.slane %v307, 2
    %v312 = vadd.f32 %v60, %v310
    %v313 = vxor.u32 %v312, 2147483648
    %v314 = vmul.f32 %v313, 1.442695
    %v315 = vpow.pop %v314
    %v316 = vadd.f32 %v315, 1.0
    %v317 = vrcp.pop %v316
    %v318 = vmul.f32 %v316, %v317
    %v319 = vsub.f32 1.0, %v318
    %v320 = vmul.f32 %v317, %v319
    %v321 = vadd.f32 %v317, %v320
    %vm322 = vweird.f32 %v316
    %vm323 = vweird.f32 %v317
    %vm324 = vmor %vm322, %vm323
    %v325 = vsel %vm324, %v317, %v321
    %v326 = vand.u32 2147483647, %v316
    %vm327 = vcmp.eq.f32.partialorder %v326, 8.507059e+37
    %v328 = vand.u32 %v316, 2147483648
    %v329 = vor.u32 1.1754944e-38, %v328
    %v330 = vsel %vm327, %v329, %v325
    %v331 = vmul.f32 1.0, %v330
    %v332 = vtanh.pop %v312
    %v334 = vrot.slane %v271, 6
    %v336 = vmul.f32 %v331, %v334
    %338 = vrot.lane.b32.xlu0 %v332, 64
    %v339 = vpop.permute.xlu0 %338
    %v341 = vmul.f32 %v331, %v339
    %343 = vrot.lane.b32.xlu0 %v341, 32
    %v344 = vpop.permute.xlu0 %343
    %v346 = vadd.f32 %v336, %v344
    %v347 = vtanh.pop %v346
    %349 = vrot.lane.b32.xlu0 %v347, 64
    %v350 = vpop.permute.xlu0 %349
    %v352 = vmul.f32 %v331, %v350
    %354 = vrot.lane.b32.xlu0 %v352, 32
    %v355 = vpop.permute.xlu0 %354
    %vm357 = vcmask 261126
    %358 = vst.msk [vmem:[#allocation2] sm:$0xc0] %vm357, %v355
    %v359 = vrot.slane %v352, 6
    %360 = vrot.lane.b32.xlu0 %v359, 32
    %v361 = vpop.permute.xlu0 %360
    %v362 = vsel %vm69, %v361, 0
    %364 = vmatpush.msra.mxu0 0.0
    %365 = vmatpush.msra.mxu0 0.0
    %366 = vmatpush.msra.mxu0 0.0
    %367 = vmatpush.msra.mxu0 0.0
    %368 = vmatpush.msra.mxu0 0.0
    %369 = vmatpush.msra.mxu0 0.0
    %370 = vmatpush.msra.mxu0 0.0
    %371 = vmatpush.msra.mxu0 0.0
    %372 = vmatpush.msra.mxu0 0.0
    %373 = vmatpush.msra.mxu0 0.0
    %374 = vmatpush.msra.mxu0 0.0
    %375 = vmatpush.msra.mxu0 0.0
    %376 = vmatpush.msra.mxu0 %v68
    %377 = vmatpush.msra.mxu0 %v67
    %378 = vmatpush.msra.mxu0 %v66
    %379 = vmatpush.msra.mxu0 %v65
    %380 = vmatmul.f32.gmra.mxu0 %v362
    %v381 = vpop.f32.mrf.mxu0
    %v382 = vadd.f32 0.0, %v381
    %383 = vdwg.mxu0
    %v384 = vadd.f32 %v63, %v382
    %v385 = vxor.u32 %v384, 2147483648
    %v386 = vmul.f32 %v385, 1.442695
    %v387 = vpow.pop %v386
    %v388 = vadd.f32 %v387, 1.0
    %v389 = vrcp.pop %v388
    %v390 = vmul.f32 %v388, %v389
    %v391 = vsub.f32 1.0, %v390
    %v392 = vmul.f32 %v389, %v391
    %v393 = vadd.f32 %v389, %v392
    %vm394 = vweird.f32 %v388
    %vm395 = vweird.f32 %v389
    %vm396 = vmor %vm394, %vm395
    %v397 = vsel %vm396, %v389, %v393
    %v398 = vand.u32 2147483647, %v388
    %vm399 = vcmp.eq.f32.partialorder %v398, 8.507059e+37
    %v400 = vand.u32 %v388, 2147483648
    %v401 = vor.u32 1.1754944e-38, %v400
    %v402 = vsel %vm399, %v401, %v397
    %v403 = vmul.f32 1.0, %v402
    %v404 = vtanh.pop %v384
    %v406 = vrot.slane %v346, 6
    %v408 = vmul.f32 %v403, %v406
    %410 = vrot.lane.b32.xlu0 %v404, 64
    %v411 = vpop.permute.xlu0 %410
    %v413 = vmul.f32 %v403, %v411
    %415 = vrot.lane.b32.xlu0 %v413, 32
    %v416 = vpop.permute.xlu0 %415
    %v418 = vadd.f32 %v408, %v416
    %v419 = vtanh.pop %v418
    %421 = vrot.lane.b32.xlu0 %v419, 64
    %v422 = vpop.permute.xlu0 %421
    %v424 = vmul.f32 %v403, %v422
    %426 = vrot.lane.b32.xlu0 %v424, 32
    %v427 = vpop.permute.xlu0 %426
    %429 = vst.msk [vmem:[#allocation2 + $0x8] sm:$0x3] %vm135, %v427
    %v430 = vsel %vm69, %v427, 0
    %432 = vmatpush.msra.mxu0 0.0
    %433 = vmatpush.msra.mxu0 0.0
    %434 = vmatpush.msra.mxu0 0.0
    %435 = vmatpush.msra.mxu0 0.0
    %436 = vmatpush.msra.mxu0 0.0
    %437 = vmatpush.msra.mxu0 0.0
    %438 = vmatpush.msra.mxu0 0.0
    %439 = vmatpush.msra.mxu0 0.0
    %440 = vmatpush.msra.mxu0 0.0
    %441 = vmatpush.msra.mxu0 0.0
    %442 = vmatpush.msra.mxu0 0.0
    %443 = vmatpush.msra.mxu0 0.0
    %444 = vmatpush.msra.mxu0 %v68
    %445 = vmatpush.msra.mxu0 %v67
    %446 = vmatpush.msra.mxu0 %v66
    %447 = vmatpush.msra.mxu0 %v65
    %448 = vmatmul.f32.gmra.mxu0 %v430
    %v449 = vpop.f32.mrf.mxu0
    %v450 = vadd.f32 0.0, %v449
    %451 = vdwg.mxu0
    %v453 = vrot.slane %v450, 6
    %v455 = vadd.f32 %v63, %v453
    %v456 = vxor.u32 %v455, 2147483648
    %v457 = vmul.f32 %v456, 1.442695
    %v458 = vpow.pop %v457
    %v459 = vadd.f32 %v458, 1.0
    %v460 = vrcp.pop %v459
    %v461 = vmul.f32 %v459, %v460
    %v462 = vsub.f32 1.0, %v461
    %v463 = vmul.f32 %v460, %v462
    %v464 = vadd.f32 %v460, %v463
    %vm465 = vweird.f32 %v459
    %vm466 = vweird.f32 %v460
    %vm467 = vmor %vm465, %vm466
    %v468 = vsel %vm467, %v460, %v464
    %v469 = vand.u32 2147483647, %v459
    %vm470 = vcmp.eq.f32.partialorder %v469, 8.507059e+37
    %v471 = vand.u32 %v459, 2147483648
    %v472 = vor.u32 1.1754944e-38, %v471
    %v473 = vsel %vm470, %v472, %v468
    %v474 = vmul.f32 1.0, %v473
    %v475 = vtanh.pop %v455
    %v477 = vrot.slane %v418, 6
    %v479 = vmul.f32 %v474, %v477
    %481 = vrot.lane.b32.xlu0 %v475, 64
    %v482 = vpop.permute.xlu0 %481
    %v484 = vmul.f32 %v474, %v482
    %486 = vrot.lane.b32.xlu0 %v484, 32
    %v487 = vpop.permute.xlu0 %486
    %v489 = vadd.f32 %v479, %v487
    %v490 = vtanh.pop %v489
    %492 = vrot.lane.b32.xlu0 %v490, 64
    %v493 = vpop.permute.xlu0 %492
    %v495 = vmul.f32 %v474, %v493
    %497 = vrot.lane.b32.xlu0 %v495, 32
    %v498 = vpop.permute.xlu0 %497
    %500 = vst.msk [vmem:[#allocation2 + $0x8] sm:$0xc] %vm207, %v498
    %v501 = vrot.slane %v495, 2
    %502 = vrot.lane.b32.xlu0 %v501, 32
    %v503 = vpop.permute.xlu0 %502
    %v504 = vsel %vm69, %v503, 0
    %506 = vmatpush.msra.mxu0 0.0
    %507 = vmatpush.msra.mxu0 0.0
    %508 = vmatpush.msra.mxu0 0.0
    %509 = vmatpush.msra.mxu0 0.0
    %510 = vmatpush.msra.mxu0 0.0
    %511 = vmatpush.msra.mxu0 0.0
    %512 = vmatpush.msra.mxu0 0.0
    %513 = vmatpush.msra.mxu0 0.0
    %514 = vmatpush.msra.mxu0 0.0
    %515 = vmatpush.msra.mxu0 0.0
    %516 = vmatpush.msra.mxu0 0.0
    %517 = vmatpush.msra.mxu0 0.0
    %518 = vmatpush.msra.mxu0 %v68
    %519 = vmatpush.msra.mxu0 %v67
    %520 = vmatpush.msra.mxu0 %v66
    %521 = vmatpush.msra.mxu0 %v65
    %522 = vmatmul.f32.gmra.mxu0 %v504
    %v523 = vpop.f32.mrf.mxu0
    %v524 = vadd.f32 0.0, %v523
    %525 = vdwg.mxu0
    %v527 = vrot.slane %v524, 4
    %v529 = vadd.f32 %v63, %v527
    %v530 = vxor.u32 %v529, 2147483648
    %v531 = vmul.f32 %v530, 1.442695
    %v532 = vpow.pop %v531
    %v533 = vadd.f32 %v532, 1.0
    %v534 = vrcp.pop %v533
    %v535 = vmul.f32 %v533, %v534
    %v536 = vsub.f32 1.0, %v535
    %v537 = vmul.f32 %v534, %v536
    %v538 = vadd.f32 %v534, %v537
    %vm539 = vweird.f32 %v533
    %vm540 = vweird.f32 %v534
    %vm541 = vmor %vm539, %vm540
    %v542 = vsel %vm541, %v534, %v538
    %v543 = vand.u32 2147483647, %v533
    %vm544 = vcmp.eq.f32.partialorder %v543, 8.507059e+37
    %v545 = vand.u32 %v533, 2147483648
    %v546 = vor.u32 1.1754944e-38, %v545
    %v547 = vsel %vm544, %v546, %v542
    %v548 = vmul.f32 1.0, %v547
    %v549 = vtanh.pop %v529
    %v551 = vrot.slane %v489, 6
    %v553 = vmul.f32 %v548, %v551
    %555 = vrot.lane.b32.xlu0 %v549, 64
    %v556 = vpop.permute.xlu0 %555
    %v558 = vmul.f32 %v548, %v556
    %560 = vrot.lane.b32.xlu0 %v558, 32
    %v561 = vpop.permute.xlu0 %560
    %v563 = vadd.f32 %v553, %v561
    %v564 = vtanh.pop %v563
    %566 = vrot.lane.b32.xlu0 %v564, 64
    %v567 = vpop.permute.xlu0 %566
    %v569 = vmul.f32 %v548, %v567
    %571 = vrot.lane.b32.xlu0 %v569, 32
    %v572 = vpop.permute.xlu0 %571
    %574 = vst.msk [vmem:[#allocation2 + $0x8] sm:$0x30] %vm282, %v572
    %v575 = vrot.slane %v569, 4
    %576 = vrot.lane.b32.xlu0 %v575, 32
    %v577 = vpop.permute.xlu0 %576
    %v578 = vsel %vm69, %v577, 0
    %580 = vmatpush.msra.mxu0 0.0
    %581 = vmatpush.msra.mxu0 0.0
    %582 = vmatpush.msra.mxu0 0.0
    %583 = vmatpush.msra.mxu0 0.0
    %584 = vmatpush.msra.mxu0 0.0
    %585 = vmatpush.msra.mxu0 0.0
    %586 = vmatpush.msra.mxu0 0.0
    %587 = vmatpush.msra.mxu0 0.0
    %588 = vmatpush.msra.mxu0 0.0
    %589 = vmatpush.msra.mxu0 0.0
    %590 = vmatpush.msra.mxu0 0.0
    %591 = vmatpush.msra.mxu0 0.0
    %592 = vmatpush.msra.mxu0 %v68
    %593 = vmatpush.msra.mxu0 %v67
    %594 = vmatpush.msra.mxu0 %v66
    %595 = vmatpush.msra.mxu0 %v65
    %596 = vmatmul.f32.gmra.mxu0 %v578
    %v597 = vpop.f32.mrf.mxu0
    %v598 = vadd.f32 0.0, %v597
    %599 = vdwg.mxu0
    %v601 = vrot.slane %v598, 2
    %v603 = vadd.f32 %v63, %v601
    %v604 = vxor.u32 %v603, 2147483648
    %v605 = vmul.f32 %v604, 1.442695
    %v606 = vpow.pop %v605
    %v607 = vadd.f32 %v606, 1.0
    %v608 = vrcp.pop %v607
    %v609 = vmul.f32 %v607, %v608
    %v610 = vsub.f32 1.0, %v609
    %v611 = vmul.f32 %v608, %v610
    %v612 = vadd.f32 %v608, %v611
    %vm613 = vweird.f32 %v607
    %vm614 = vweird.f32 %v608
    %vm615 = vmor %vm613, %vm614
    %v616 = vsel %vm615, %v608, %v612
    %v617 = vand.u32 2147483647, %v607
    %vm618 = vcmp.eq.f32.partialorder %v617, 8.507059e+37
    %v619 = vand.u32 %v607, 2147483648
    %v620 = vor.u32 1.1754944e-38, %v619
    %v621 = vsel %vm618, %v620, %v616
    %v622 = vmul.f32 1.0, %v621
    %v623 = vtanh.pop %v603
    %v625 = vrot.slane %v563, 6
    %v627 = vmul.f32 %v622, %v625
    %629 = vrot.lane.b32.xlu0 %v623, 64
    %v630 = vpop.permute.xlu0 %629
    %v632 = vmul.f32 %v622, %v630
    %634 = vrot.lane.b32.xlu0 %v632, 32
    %v635 = vpop.permute.xlu0 %634
    %v637 = vadd.f32 %v627, %v635
    %v638 = vtanh.pop %v637
    %640 = vrot.lane.b32.xlu0 %v638, 64
    %v641 = vpop.permute.xlu0 %640
    %v643 = vmul.f32 %v622, %v641
    %645 = vrot.lane.b32.xlu0 %v643, 32
    %v646 = vpop.permute.xlu0 %645
    %648 = vst.msk [vmem:[#allocation2 + $0x8] sm:$0xc0] %vm357, %v646
    %v649 = vld [vmem:[#allocation2] ss:$8 sm:$0x3]
    %v650 = vld [vmem:[%s4] sm:$0xff]
    %v651 = vld [vmem:[%s4 + $0x8] sm:$0xff]
    %v652 = vld [vmem:[%s4 + $0x10] sm:$0xff]
    %v653 = vld [vmem:[%s4 + $0x18] sm:$0xff]
    %s654 = scalar_lea.vmem [#allocation2], 1
    %v655 = vld [vmem:[%s654] ss:$8 sm:$0x3]
    %s656 = scalar_lea.vmem %s4, 32
    %v657 = vld [vmem:[%s656] sm:$0xff]
    %v658 = vld [vmem:[%s656 + $0x8] sm:$0xff]
    %v659 = vld [vmem:[%s656 + $0x10] sm:$0xff]
    %v660 = vld [vmem:[%s656 + $0x18] sm:$0xff]
    %v662 = vsel %vm69, %v655, 0
    %664 = vmatpush.msra.mxu0 0.0
    %665 = vmatpush.msra.mxu0 0.0
    %666 = vmatpush.msra.mxu0 0.0
    %667 = vmatpush.msra.mxu0 0.0
    %668 = vmatpush.msra.mxu0 0.0
    %669 = vmatpush.msra.mxu0 0.0
    %670 = vmatpush.msra.mxu0 0.0
    %671 = vmatpush.msra.mxu0 0.0
    %672 = vmatpush.msra.mxu0 0.0
    %673 = vmatpush.msra.mxu0 0.0
    %674 = vmatpush.msra.mxu0 0.0
    %675 = vmatpush.msra.mxu0 0.0
    %676 = vmatpush.msra.mxu0 %v660
    %677 = vmatpush.msra.mxu0 %v659
    %678 = vmatpush.msra.mxu0 %v658
    %679 = vmatpush.msra.mxu0 %v657
    %680 = vmatmul.f32.gmra.mxu0 %v662
    %v681 = vpop.f32.mrf.mxu0
    %v682 = vadd.f32 0.0, %v681
    %683 = vdwg.mxu0
    %v685 = vsel %vm69, %v649, 0
    %687 = vmatpush.msra.mxu0 0.0
    %688 = vmatpush.msra.mxu0 0.0
    %689 = vmatpush.msra.mxu0 0.0
    %690 = vmatpush.msra.mxu0 0.0
    %691 = vmatpush.msra.mxu0 0.0
    %692 = vmatpush.msra.mxu0 0.0
    %693 = vmatpush.msra.mxu0 0.0
    %694 = vmatpush.msra.mxu0 0.0
    %695 = vmatpush.msra.mxu0 0.0
    %696 = vmatpush.msra.mxu0 0.0
    %697 = vmatpush.msra.mxu0 0.0
    %698 = vmatpush.msra.mxu0 0.0
    %699 = vmatpush.msra.mxu0 %v653
    %700 = vmatpush.msra.mxu0 %v652
    %701 = vmatpush.msra.mxu0 %v651
    %702 = vmatpush.msra.mxu0 %v650
    %703 = vmatmul.f32.gmra.mxu0 %v685
    %v704 = vpop.f32.mrf.mxu0
    %v705 = vadd.f32 %v682, %v704
    %706 = vdwg.mxu0
    %s707 = scalar_lea.vmem [#allocation2], 2
    %v708 = vld [vmem:[%s707] ss:$8 sm:$0x3]
    %s709 = scalar_lea.vmem %s4, 64
    %v710 = vld [vmem:[%s709] sm:$0xff]
    %v711 = vld [vmem:[%s709 + $0x8] sm:$0xff]
    %v712 = vld [vmem:[%s709 + $0x10] sm:$0xff]
    %v713 = vld [vmem:[%s709 + $0x18] sm:$0xff]
    %v715 = vsel %vm69, %v708, 0
    %717 = vmatpush.msra.mxu0 0.0
    %718 = vmatpush.msra.mxu0 0.0
    %719 = vmatpush.msra.mxu0 0.0
    %720 = vmatpush.msra.mxu0 0.0
    %721 = vmatpush.msra.mxu0 0.0
    %722 = vmatpush.msra.mxu0 0.0
    %723 = vmatpush.msra.mxu0 0.0
    %724 = vmatpush.msra.mxu0 0.0
    %725 = vmatpush.msra.mxu0 0.0
    %726 = vmatpush.msra.mxu0 0.0
    %727 = vmatpush.msra.mxu0 0.0
    %728 = vmatpush.msra.mxu0 0.0
    %729 = vmatpush.msra.mxu0 %v713
    %730 = vmatpush.msra.mxu0 %v712
    %731 = vmatpush.msra.mxu0 %v711
    %732 = vmatpush.msra.mxu0 %v710
    %733 = vmatmul.f32.gmra.mxu0 %v715
    %v734 = vpop.f32.mrf.mxu0
    %v735 = vadd.f32 0.0, %v734
    %736 = vdwg.mxu0
    %v737 = vadd.f32 %v705, %v735
    %s738 = scalar_lea.vmem [#allocation2], 3
    %v739 = vld [vmem:[%s738] ss:$8 sm:$0x3]
    %s740 = scalar_lea.vmem %s4, 96
    %v741 = vld [vmem:[%s740] sm:$0xff]
    %v742 = vld [vmem:[%s740 + $0x8] sm:$0xff]
    %v743 = vld [vmem:[%s740 + $0x10] sm:$0xff]
    %v744 = vld [vmem:[%s740 + $0x18] sm:$0xff]
    %v746 = vsel %vm69, %v739, 0
    %748 = vmatpush.msra.mxu0 0.0
    %749 = vmatpush.msra.mxu0 0.0
    %750 = vmatpush.msra.mxu0 0.0
    %751 = vmatpush.msra.mxu0 0.0
    %752 = vmatpush.msra.mxu0 0.0
    %753 = vmatpush.msra.mxu0 0.0
    %754 = vmatpush.msra.mxu0 0.0
    %755 = vmatpush.msra.mxu0 0.0
    %756 = vmatpush.msra.mxu0 0.0
    %757 = vmatpush.msra.mxu0 0.0
    %758 = vmatpush.msra.mxu0 0.0
    %759 = vmatpush.msra.mxu0 0.0
    %760 = vmatpush.msra.mxu0 %v744
    %761 = vmatpush.msra.mxu0 %v743
    %762 = vmatpush.msra.mxu0 %v742
    %763 = vmatpush.msra.mxu0 %v741
    %764 = vmatmul.f32.gmra.mxu0 %v746
    %v765 = vpop.f32.mrf.mxu0
    %v766 = vadd.f32 0.0, %v765
    %767 = vdwg.mxu0
    %v768 = vadd.f32 %v737, %v766
    %s769 = scalar_lea.vmem [#allocation2], 4
    %v770 = vld [vmem:[%s769] ss:$8 sm:$0x3]
    %s771 = scalar_lea.vmem %s4, 128
    %v772 = vld [vmem:[%s771] sm:$0xff]
    %v773 = vld [vmem:[%s771 + $0x8] sm:$0xff]
    %v774 = vld [vmem:[%s771 + $0x10] sm:$0xff]
    %v775 = vld [vmem:[%s771 + $0x18] sm:$0xff]
    %v777 = vsel %vm69, %v770, 0
    %779 = vmatpush.msra.mxu0 0.0
    %780 = vmatpush.msra.mxu0 0.0
    %781 = vmatpush.msra.mxu0 0.0
    %782 = vmatpush.msra.mxu0 0.0
    %783 = vmatpush.msra.mxu0 0.0
    %784 = vmatpush.msra.mxu0 0.0
    %785 = vmatpush.msra.mxu0 0.0
    %786 = vmatpush.msra.mxu0 0.0
    %787 = vmatpush.msra.mxu0 0.0
    %788 = vmatpush.msra.mxu0 0.0
    %789 = vmatpush.msra.mxu0 0.0
    %790 = vmatpush.msra.mxu0 0.0
    %791 = vmatpush.msra.mxu0 %v775
    %792 = vmatpush.msra.mxu0 %v774
    %793 = vmatpush.msra.mxu0 %v773
    %794 = vmatpush.msra.mxu0 %v772
    %795 = vmatmul.f32.gmra.mxu0 %v777
    %v796 = vpop.f32.mrf.mxu0
    %v797 = vadd.f32 0.0, %v796
    %798 = vdwg.mxu0
    %v799 = vadd.f32 %v768, %v797
    %s800 = scalar_lea.vmem [#allocation2], 5
    %v801 = vld [vmem:[%s800] ss:$8 sm:$0x3]
    %s802 = scalar_lea.vmem %s4, 160
    %v803 = vld [vmem:[%s802] sm:$0xff]
    %v804 = vld [vmem:[%s802 + $0x8] sm:$0xff]
    %v805 = vld [vmem:[%s802 + $0x10] sm:$0xff]
    %v806 = vld [vmem:[%s802 + $0x18] sm:$0xff]
    %v808 = vsel %vm69, %v801, 0
    %810 = vmatpush.msra.mxu0 0.0
    %811 = vmatpush.msra.mxu0 0.0
    %812 = vmatpush.msra.mxu0 0.0
    %813 = vmatpush.msra.mxu0 0.0
    %814 = vmatpush.msra.mxu0 0.0
    %815 = vmatpush.msra.mxu0 0.0
    %816 = vmatpush.msra.mxu0 0.0
    %817 = vmatpush.msra.mxu0 0.0
    %818 = vmatpush.msra.mxu0 0.0
    %819 = vmatpush.msra.mxu0 0.0
    %820 = vmatpush.msra.mxu0 0.0
    %821 = vmatpush.msra.mxu0 0.0
    %822 = vmatpush.msra.mxu0 %v806
    %823 = vmatpush.msra.mxu0 %v805
    %824 = vmatpush.msra.mxu0 %v804
    %825 = vmatpush.msra.mxu0 %v803
    %826 = vmatmul.f32.gmra.mxu0 %v808
    %v827 = vpop.f32.mrf.mxu0
    %v828 = vadd.f32 0.0, %v827
    %829 = vdwg.mxu0
    %v830 = vadd.f32 %v799, %v828
    %s831 = scalar_lea.vmem [#allocation2], 6
    %v832 = vld [vmem:[%s831] ss:$8 sm:$0x3]
    %s833 = scalar_lea.vmem %s4, 192
    %v834 = vld [vmem:[%s833] sm:$0xff]
    %v835 = vld [vmem:[%s833 + $0x8] sm:$0xff]
    %v836 = vld [vmem:[%s833 + $0x10] sm:$0xff]
    %v837 = vld [vmem:[%s833 + $0x18] sm:$0xff]
    %v839 = vsel %vm69, %v832, 0
    %841 = vmatpush.msra.mxu0 0.0
    %842 = vmatpush.msra.mxu0 0.0
    %843 = vmatpush.msra.mxu0 0.0
    %844 = vmatpush.msra.mxu0 0.0
    %845 = vmatpush.msra.mxu0 0.0
    %846 = vmatpush.msra.mxu0 0.0
    %847 = vmatpush.msra.mxu0 0.0
    %848 = vmatpush.msra.mxu0 0.0
    %849 = vmatpush.msra.mxu0 0.0
    %850 = vmatpush.msra.mxu0 0.0
    %851 = vmatpush.msra.mxu0 0.0
    %852 = vmatpush.msra.mxu0 0.0
    %853 = vmatpush.msra.mxu0 %v837
    %854 = vmatpush.msra.mxu0 %v836
    %855 = vmatpush.msra.mxu0 %v835
    %856 = vmatpush.msra.mxu0 %v834
    %857 = vmatmul.f32.gmra.mxu0 %v839
    %v858 = vpop.f32.mrf.mxu0
    %v859 = vadd.f32 0.0, %v858
    %860 = vdwg.mxu0
    %v861 = vadd.f32 %v830, %v859
    %s862 = scalar_lea.vmem [#allocation2], 7
    %v863 = vld [vmem:[%s862] ss:$8 sm:$0x3]
    %s864 = scalar_lea.vmem %s4, 224
    %v865 = vld [vmem:[%s864] sm:$0xff]
    %v866 = vld [vmem:[%s864 + $0x8] sm:$0xff]
    %v867 = vld [vmem:[%s864 + $0x10] sm:$0xff]
    %v868 = vld [vmem:[%s864 + $0x18] sm:$0xff]
    %v870 = vsel %vm69, %v863, 0
    %872 = vmatpush.msra.mxu0 0.0
    %873 = vmatpush.msra.mxu0 0.0
    %874 = vmatpush.msra.mxu0 0.0
    %875 = vmatpush.msra.mxu0 0.0
    %876 = vmatpush.msra.mxu0 0.0
    %877 = vmatpush.msra.mxu0 0.0
    %878 = vmatpush.msra.mxu0 0.0
    %879 = vmatpush.msra.mxu0 0.0
    %880 = vmatpush.msra.mxu0 0.0
    %881 = vmatpush.msra.mxu0 0.0
    %882 = vmatpush.msra.mxu0 0.0
    %883 = vmatpush.msra.mxu0 0.0
    %884 = vmatpush.msra.mxu0 %v868
    %885 = vmatpush.msra.mxu0 %v867
    %886 = vmatpush.msra.mxu0 %v866
    %887 = vmatpush.msra.mxu0 %v865
    %888 = vmatmul.f32.gmra.mxu0 %v870
    %v889 = vpop.f32.mrf.mxu0
    %v890 = vadd.f32 0.0, %v889
    %891 = vdwg.mxu0
    %v892 = vadd.f32 %v861, %v890
    %v893 = vld [vmem:[%s5] sm:$0x1]
    %v895 = vperm.slane %v893, 0
    %v897 = vadd.f32 %v892, %v895
    %vm898 = vcmask 58368
    %899 = vst.msk [vmem:[#allocation3] sm:$0x3] %vm898, %v897
    // Predicated region
    $region26: #{jarvis_lstm_forward.1} parent=1 // pred_check
      _
    $region27: #{jarvis_lstm_forward.1} parent=1 // pred_check_branch
      %901 = sbr.rel (0) target = $region29
    $region28: #{jarvis_lstm_forward.1} parent=1 // pred_region
      %903 = vsyncadd [#allocation4], 0
      %s905 = sshll.u32 [#allocation3], 4
      %s906 = int_to_ptr.vmem [resolvable:$true] %s905
      %s907 = sshll.u32 %s6, 4
      %s908 = int_to_ptr.hbm [resolvable:$true] %s907
      %910 = dma.vmem_to_hbm [thread:$0]  %s906, 32, %s908, [#allocation4]
    $region29: #{jarvis_lstm_forward.1} parent=1 // pred_fallthru
      _
    // Predicated region
    $region30: #{jarvis_lstm_forward.1} parent=1 // pred_check
      _
    $region31: #{jarvis_lstm_forward.1} parent=1 // pred_check_branch
      %912 = sbr.rel (0) target = $region33
    $region32: #{jarvis_lstm_forward.1} parent=1 // pred_region
      %914 = dma.done [#allocation4], 32
    $region33: #{jarvis_lstm_forward.1} parent=1 // pred_fallthru
      _
    %915 = vsyncpa [#allocation4], 1

</llo_original>
